<compile_context>
chip_gen: v7x
topology: tpu7x:2x2x1
jax: 0.10.0
libtpu: 0.0.40
codegen_flags: <defaults>
</compile_context>

<pallas_src>
import functools

import jax
import jax.numpy as jnp
from jax.experimental import pallas as pl
from jax.experimental.pallas import tpu as pltpu

LANES = 128
NEG_INF = -1e30


def _round_up(a, m):
    return (a + m - 1) // m * m


def decoder_kernel(
    x_ref,       # VMEM (TB, C)  f32   pipelined
    ln_g_ref,    # VMEM (1, C)   f32   resident
    ln_b_ref,    # VMEM (1, C)   f32   resident
    w1_ref,      # VMEM (C, C)   bf16  resident
    b1_ref,      # VMEM (1, C)   f32   resident
    w2_ref,      # VMEM (C, Kp)  bf16  resident (padded cols zero)
    b2_ref,      # VMEM (1, Kp)  f32   resident (padded cols NEG_INF)
    emb_ref,     # VMEM (Kp, C)  bf16  resident (padded rows zero)
    *rest,       # [gumbel (TB,Kp) | sample_in (TB,1)], then output refs
    mode,                    # "provided" | "max" | "stochastic"  (trace-time)
    conditional_sampling,
    pack_scalars,            # fold sample/log_prob/entropy into padded logits lanes
):
    idx = 0
    gumbel_ref = None
    sample_in_ref = None
    if mode == "stochastic":
        gumbel_ref = rest[idx]
        idx += 1
    elif mode == "provided":
        sample_in_ref = rest[idx]
        idx += 1
    out_refs = rest[idx:]
    oi = 0
    logits_ref = out_refs[oi]
    oi += 1
    scal_ref = None
    if not pack_scalars:
        scal_ref = out_refs[oi]
        oi += 1
    xout_ref = out_refs[oi] if conditional_sampling else None

    x = x_ref[...]                                            # (TB, C) f32

    # ---- LayerNorm (one-pass stats: two independent XLU reductions) ----
    inv_c = 1.0 / x.shape[-1]
    mean = jnp.sum(x, -1, keepdims=True) * inv_c
    ex2 = jnp.sum(x * x, -1, keepdims=True) * inv_c
    var = ex2 - mean * mean
    xn = (x - mean) * jax.lax.rsqrt(var + 1e-5)
    xn = xn * ln_g_ref[...] + ln_b_ref[...]

    # ---- MLP: Linear -> ReLU -> Linear (bf16 MXU operands, f32 accumulation) ----
    h = jnp.dot(xn.astype(jnp.bfloat16), w1_ref[...],
                preferred_element_type=jnp.float32) + b1_ref[...]
    h = jnp.maximum(h, 0.0)
    logits = jnp.dot(h.astype(jnp.bfloat16), w2_ref[...],
                     preferred_element_type=jnp.float32) + b2_ref[...]

    tb, kp = logits.shape
    iota_k = jax.lax.broadcasted_iota(jnp.int32, (tb, kp), 1)

    # ---- sampling (trace-time specialized; unused reductions never emitted) ----
    if mode == "provided":
        physical = sample_in_ref[...].astype(jnp.int32)       # (TB, 1)
        onehot = iota_k == physical
        m = jnp.max(logits, -1, keepdims=True)
        sel = jnp.sum(jnp.where(onehot, logits, 0.0), -1, keepdims=True)
    elif mode == "max":
        # argmax(probs) == argmax(logits); reuse the max for m and sel
        pmax = jnp.max(logits, -1, keepdims=True)
        physical = jnp.min(jnp.where(logits == pmax, iota_k, kp), -1, keepdims=True)
        onehot = iota_k == physical
        m = pmax
        sel = pmax
    else:  # "stochastic": Gumbel-max categorical sample (noise supplied by wrapper)
        perturbed = logits + gumbel_ref[...]                  # padded lanes stay ~NEG_INF
        pmax = jnp.max(perturbed, -1, keepdims=True)
        physical = jnp.min(jnp.where(perturbed == pmax, iota_k, kp), -1, keepdims=True)
        onehot = iota_k == physical
        m = jnp.max(logits, -1, keepdims=True)
        sel = jnp.sum(jnp.where(onehot, logits, 0.0), -1, keepdims=True)

    # ---- Categorical log_prob / entropy (from unperturbed logits) ----
    ez = jnp.exp(logits - m)                                  # padded lanes -> 0
    sez = jnp.sum(ez, -1, keepdims=True)
    lse = m + jnp.log(sez)                                    # (TB, 1)
    logp = sel - lse
    wsum = jnp.sum(ez * logits, -1, keepdims=True)
    ent = lse - wsum / sez                                    # exact divide (cheap, (TB,1))

    # ---- outputs ----
    if pack_scalars:
        # Write sample / log_prob / entropy into spare padded logits lanes (Kp-3..Kp-1):
        # one output stream instead of two.
        packed = jnp.where(iota_k == kp - 3, physical.astype(jnp.float32),
                 jnp.where(iota_k == kp - 2, logp,
                 jnp.where(iota_k == kp - 1, ent, logits)))
        logits_ref[...] = packed
    else:
        logits_ref[...] = logits
        lane = jax.lax.broadcasted_iota(jnp.int32, (tb, LANES), 1)
        scal_ref[...] = jnp.where(lane == 0, physical.astype(jnp.float32),
                        jnp.where(lane == 1, logp,
                        jnp.where(lane == 2, ent, 0.0)))

    # ---- embedding lookup (one-hot matmul gather, bf16 operands) + residual ----
    if conditional_sampling:
        emb = jnp.dot(onehot.astype(jnp.bfloat16), emb_ref[...],
                      preferred_element_type=jnp.float32)
        xout_ref[...] = x + emb

    # TODO(synk): `equivalence` branch (equivalent_outcome_categorical) not implemented —
    # that helper is not part of this module and was not provided.


def prepare_params(raw):
    """One-time padding / bf16 casting of the parameters (hoisted out of forward)."""
    C = raw["w1"].shape[0]
    K = raw["w2"].shape[1]
    Kp = _round_up(K, LANES)
    return {
        "C": C, "K": K, "Kp": Kp,
        "ln_g": jnp.asarray(raw["ln_g"], jnp.float32).reshape(1, C),
        "ln_b": jnp.asarray(raw["ln_b"], jnp.float32).reshape(1, C),
        "w1": jnp.asarray(raw["w1"], jnp.float32).astype(jnp.bfloat16),
        "b1": jnp.asarray(raw["b1"], jnp.float32).reshape(1, C),
        "w2": jnp.zeros((C, Kp), jnp.bfloat16).at[:, :K].set(
            jnp.asarray(raw["w2"], jnp.float32).astype(jnp.bfloat16)),
        "b2": jnp.full((1, Kp), NEG_INF, jnp.float32).at[:, :K].set(
            jnp.asarray(raw["b2"], jnp.float32).reshape(1, K)),
        "emb": jnp.zeros((Kp, C), jnp.bfloat16).at[:K, :].set(
            jnp.asarray(raw["emb"], jnp.float32).astype(jnp.bfloat16)),
    }


def _pick_tb(B):
    # Small batch: single 8-row block. Otherwise: at least 2 blocks (v7x megacore
    # sharding via dimension_semantics=("parallel",)), <=512 rows per block, and
    # block count chosen to minimize batch padding waste.
    if B <= 8:
        return _round_up(B, 8)
    n_blocks = max(2, -(-B // 512))
    return min(512, _round_up(-(-B // n_blocks), 8))


def discrete_decoder_forward(
    prepared,
    x,
    *,
    sample=None,
    sample_max=False,
    conditional_sampling=True,
    rng=None,
):
    """Returns (sample, log_prob, entropy, x_out, logits) like DiscreteDecoder.forward."""
    x = jnp.asarray(x, jnp.float32)
    B, C = x.shape
    assert C == prepared["C"]
    K, Kp = prepared["K"], prepared["Kp"]

    TB = _pick_tb(B)
    Bp = _round_up(B, TB)
    grid = (Bp // TB,)

    if sample is not None:
        mode = "provided"
    elif sample_max:
        mode = "max"
    else:
        mode = "stochastic"
        assert rng is not None, "rng required for stochastic sampling"

    pack_scalars = (Kp - K) >= 3

    xp = x if Bp == B else jnp.zeros((Bp, C), jnp.float32).at[:B].set(x)

    def tiled(last):
        return pl.BlockSpec((TB, last), lambda i: (i, 0))

    def resident(shape):
        # Constant index_map -> single VMEM buffer (no pointless double-buffering).
        return pl.BlockSpec(shape, lambda i: (0, 0), pipeline_mode=pl.Buffered(1))

    in_specs = [
        tiled(C),              # x
        resident((1, C)),      # ln_g
        resident((1, C)),      # ln_b
        resident((C, C)),      # w1
        resident((1, C)),      # b1
        resident((C, Kp)),     # w2
        resident((1, Kp)),     # b2
        resident((Kp, C)),     # emb
    ]
    inputs = [xp, prepared["ln_g"], prepared["ln_b"], prepared["w1"], prepared["b1"],
              prepared["w2"], prepared["b2"], prepared["emb"]]

    if mode == "stochastic":
        gumbel = jax.random.gumbel(rng, (Bp, Kp), jnp.float32)
        in_specs.append(tiled(Kp))
        inputs.append(gumbel)
    elif mode == "provided":
        s_in = jnp.zeros((Bp, 1), jnp.int32).at[:B, 0].set(
            jnp.asarray(sample, jnp.int32).reshape(B))
        in_specs.append(tiled(1))
        inputs.append(s_in)

    out_shape = [jax.ShapeDtypeStruct((Bp, Kp), jnp.float32)]     # logits (+ packed scalars)
    out_specs = [tiled(Kp)]
    if not pack_scalars:
        out_shape.append(jax.ShapeDtypeStruct((Bp, LANES), jnp.float32))
        out_specs.append(tiled(LANES))
    if conditional_sampling:
        out_shape.append(jax.ShapeDtypeStruct((Bp, C), jnp.float32))
        out_specs.append(tiled(C))

    # ---- explicit VMEM budget: single-buffered residents + double-buffered tiles ----
    resident_bytes = (C * C + C * Kp + Kp * C) * 2 + (3 * C + Kp) * 4
    tile_bytes = TB * C * 4 + TB * Kp * 4
    if mode == "stochastic":
        tile_bytes += TB * Kp * 4
    elif mode == "provided":
        tile_bytes += TB * 4
    if not pack_scalars:
        tile_bytes += TB * LANES * 4
    if conditional_sampling:
        tile_bytes += TB * C * 4
    vmem_limit = int(min(resident_bytes + 2 * tile_bytes + (4 << 20), 64 << 20))

    kernel = functools.partial(decoder_kernel, mode=mode,
                               conditional_sampling=conditional_sampling,
                               pack_scalars=pack_scalars)

    outs = pl.pallas_call(
        kernel,
        out_shape=tuple(out_shape),
        grid_spec=pltpu.PrefetchScalarGridSpec(
            num_scalar_prefetch=0,
            grid=grid,
            in_specs=in_specs,
            out_specs=tuple(out_specs),
        ),
        compiler_params=pltpu.CompilerParams(
            dimension_semantics=("parallel",),
            vmem_limit_bytes=vmem_limit,
        ),
    )(*inputs)
    outs = list(outs) if isinstance(outs, (tuple, list)) else [outs]

    logits_full = outs[0]
    logits = logits_full[:B, :K]
    if pack_scalars:
        sample_f = logits_full[:B, Kp - 3]
        log_prob = logits_full[:B, Kp - 2]
        entropy = logits_full[:B, Kp - 1]
        next_out = 1
    else:
        scal = outs[1]
        sample_f = scal[:B, 0]
        log_prob = scal[:B, 1]
        entropy = scal[:B, 2]
        next_out = 2

    if mode == "provided":
        sample_out = jnp.asarray(sample, jnp.int32).reshape(B)
    else:
        sample_out = sample_f.astype(jnp.int32)

    if conditional_sampling:
        x_out = outs[next_out][:B]
    else:
        x_out = x                 # unchanged input; no HBM writeback emitted
    return sample_out, log_prob, entropy, x_out, logits


def init_params(key, channels, num_classes):
    k1, k2, k3 = jax.random.split(key, 3)
    scale1 = 1.0 / jnp.sqrt(channels)
    return {
        "ln_g": jnp.ones((channels,), jnp.float32),
        "ln_b": jnp.zeros((channels,), jnp.float32),
        "w1": jax.random.normal(k1, (channels, channels), jnp.float32) * scale1,
        "b1": jnp.zeros((channels,), jnp.float32),
        "w2": jax.random.normal(k2, (channels, num_classes), jnp.float32) * scale1,
        "b2": jnp.zeros((num_classes,), jnp.float32),
        "emb": jax.random.normal(k3, (num_classes, channels), jnp.float32) * 0.02,
    }


def reference_forward(raw, x, sample, conditional_sampling):
    """Pure-JAX reference mimicking the kernel's bf16 matmul operand rounding."""
    f = lambda a: jnp.asarray(a, jnp.float32)
    bf = lambda a: f(a).astype(jnp.bfloat16).astype(jnp.float32)
    x = f(x)
    mean = x.mean(-1, keepdims=True)
    var = ((x - mean) ** 2).mean(-1, keepdims=True)
    xn = (x - mean) / jnp.sqrt(var + 1e-5) * f(raw["ln_g"]) + f(raw["ln_b"])
    h = jnp.maximum(bf(xn) @ bf(raw["w1"]) + f(raw["b1"]), 0.0)
    logits = bf(h) @ bf(raw["w2"]) + f(raw["b2"])
    lse = jax.scipy.special.logsumexp(logits, -1)
    logp = jnp.take_along_axis(logits, sample[:, None], -1)[:, 0] - lse
    p = jax.nn.softmax(logits, -1)
    ent = lse - jnp.sum(p * logits, -1)
    xo = x + bf(raw["emb"])[sample] if conditional_sampling else x
    return logp, ent, xo, logits


if __name__ == "__main__":
    B, C, K = 8, 32, 16  # batch, config.channels, num_classes

    key = jax.random.PRNGKey(0)
    k_param, k_x, k_samp = jax.random.split(key, 3)
    raw_params = init_params(k_param, C, K)
    params = prepare_params(raw_params)
    x = jax.random.normal(k_x, (B, C), jnp.float32)

    ok = True

    # 1) sample_max=True path (deterministic argmax of the categorical)
    s_max, lp_max, ent_max, x_max, logits_max = discrete_decoder_forward(
        params, x, sample_max=True, conditional_sampling=True)
    jax.block_until_ready((s_max, lp_max, ent_max, x_max, logits_max))
    for a in (lp_max, ent_max, x_max, logits_max):
        ok &= bool(jnp.all(jnp.isfinite(a)))
    ok &= bool(jnp.all((s_max >= 0) & (s_max < K)))

    # 2) stochastic sampling path (Gumbel-max with wrapper-generated noise)
    s_rnd, lp_rnd, ent_rnd, x_rnd, logits_rnd = discrete_decoder_forward(
        params, x, sample_max=False, conditional_sampling=True, rng=k_samp)
    jax.block_until_ready((s_rnd, lp_rnd, ent_rnd, x_rnd, logits_rnd))
    for a in (lp_rnd, ent_rnd, x_rnd, logits_rnd):
        ok &= bool(jnp.all(jnp.isfinite(a)))
    ok &= bool(jnp.all((s_rnd >= 0) & (s_rnd < K)))

    # 3) caller-provided sample, conditional_sampling=True -> compare against reference
    provided = jnp.arange(B, dtype=jnp.int32) % K
    s_prov, lp_prov, ent_prov, x_prov, logits_prov = discrete_decoder_forward(
        params, x, sample=provided, conditional_sampling=True)
    jax.block_until_ready((s_prov, lp_prov, ent_prov, x_prov, logits_prov))
    ok &= bool(jnp.all(s_prov == provided))
    lp_ref, ent_ref, xo_ref, lg_ref = reference_forward(raw_params, x, provided, True)
    ok &= bool(jnp.allclose(logits_prov, lg_ref, atol=5e-3, rtol=5e-3))
    ok &= bool(jnp.allclose(lp_prov, lp_ref, atol=5e-3, rtol=5e-3))
    ok &= bool(jnp.allclose(ent_prov, ent_ref, atol=5e-3, rtol=5e-3))
    ok &= bool(jnp.allclose(x_prov, xo_ref, atol=5e-3, rtol=5e-3))

    # 4) conditional_sampling=False path (no residual / no xout writeback)
    s_nc, lp_nc, ent_nc, x_nc, logits_nc = discrete_decoder_forward(
        params, x, sample=provided, conditional_sampling=False)
    jax.block_until_ready((s_nc, lp_nc, ent_nc, x_nc, logits_nc))
    ok &= bool(jnp.all(s_nc == provided))
    ok &= bool(jnp.allclose(x_nc, x))
    ok &= bool(jnp.all(jnp.isfinite(lp_nc)) and jnp.all(jnp.isfinite(ent_nc)))

    assert ok, "sanity / reference check failed"
    print("KERNEL_OK")
</pallas_src>

<mosaic_0001>
module attributes {stable_mosaic.version = 11 : i64} {
  func.func @decoder_kernel(%arg0: i32, %arg1: memref<8x32xf32, #tpu.memory_space<vmem>>, %arg2: memref<1x32xf32, #tpu.memory_space<vmem>>, %arg3: memref<1x32xf32, #tpu.memory_space<vmem>>, %arg4: memref<32x32xbf16, #tpu.memory_space<vmem>>, %arg5: memref<1x32xf32, #tpu.memory_space<vmem>>, %arg6: memref<32x128xbf16, #tpu.memory_space<vmem>>, %arg7: memref<1x128xf32, #tpu.memory_space<vmem>>, %arg8: memref<128x32xbf16, #tpu.memory_space<vmem>>, %arg9: memref<8x128xf32, #tpu.memory_space<vmem>>, %arg10: memref<8x32xf32, #tpu.memory_space<vmem>>) attributes {dimension_semantics = [#tpu.dimension_semantics<parallel>], iteration_bounds = array<i64: 1>, scalar_prefetch = 0 : i64, scratch_operands = 0 : i64, tpu.core_type = #tpu.core_type<tc>, window_params = [{transform_indices = @transform_0, window_bounds = array<i64: 8, 32>}, {pipeline_mode = #tpu.pipeline_mode<synchronous>, transform_indices = @transform_1, window_bounds = array<i64: 1, 32>}, {pipeline_mode = #tpu.pipeline_mode<synchronous>, transform_indices = @transform_2, window_bounds = array<i64: 1, 32>}, {pipeline_mode = #tpu.pipeline_mode<synchronous>, transform_indices = @transform_3, window_bounds = array<i64: 32, 32>}, {pipeline_mode = #tpu.pipeline_mode<synchronous>, transform_indices = @transform_4, window_bounds = array<i64: 1, 32>}, {pipeline_mode = #tpu.pipeline_mode<synchronous>, transform_indices = @transform_5, window_bounds = array<i64: 32, 128>}, {pipeline_mode = #tpu.pipeline_mode<synchronous>, transform_indices = @transform_6, window_bounds = array<i64: 1, 128>}, {pipeline_mode = #tpu.pipeline_mode<synchronous>, transform_indices = @transform_7, window_bounds = array<i64: 128, 32>}, {transform_indices = @transform_8, window_bounds = array<i64: 8, 128>}, {transform_indices = @transform_9, window_bounds = array<i64: 8, 32>}]} {
    %c0 = arith.constant 0 : index
    %c0_0 = arith.constant 0 : index
    %0 = vector.load %arg1[%c0, %c0_0] : memref<8x32xf32, #tpu.memory_space<vmem>>, vector<8x32xf32>
    %cst = arith.constant dense<0.000000e+00> : vector<8xf32>
    %1 = vector.multi_reduction <add>, %0, %cst [1] : vector<8x32xf32> to vector<8xf32>
    %2 = vector.shape_cast %1 : vector<8xf32> to vector<8x1xf32>
    %cst_1 = arith.constant 3.125000e-02 : f32
    %3 = vector.broadcast %cst_1 : f32 to vector<8x1xf32>
    %4 = arith.mulf %2, %3 : vector<8x1xf32>
    %5 = arith.mulf %0, %0 : vector<8x32xf32>
    %cst_2 = arith.constant dense<0.000000e+00> : vector<8xf32>
    %6 = vector.multi_reduction <add>, %5, %cst_2 [1] : vector<8x32xf32> to vector<8xf32>
    %7 = vector.shape_cast %6 : vector<8xf32> to vector<8x1xf32>
    %cst_3 = arith.constant 3.125000e-02 : f32
    %8 = vector.broadcast %cst_3 : f32 to vector<8x1xf32>
    %9 = arith.mulf %7, %8 : vector<8x1xf32>
    %10 = arith.mulf %4, %4 : vector<8x1xf32>
    %11 = arith.subf %9, %10 : vector<8x1xf32>
    %12 = vector.broadcast %4 : vector<8x1xf32> to vector<8x32xf32>
    %13 = arith.subf %0, %12 : vector<8x32xf32>
    %cst_4 = arith.constant 9.99999974E-6 : f32
    %14 = vector.broadcast %cst_4 : f32 to vector<8x1xf32>
    %15 = arith.addf %11, %14 : vector<8x1xf32>
    %16 = math.rsqrt %15 : vector<8x1xf32>
    %17 = vector.broadcast %16 : vector<8x1xf32> to vector<8x32xf32>
    %18 = arith.mulf %13, %17 : vector<8x32xf32>
    %c0_5 = arith.constant 0 : index
    %c0_6 = arith.constant 0 : index
    %19 = vector.load %arg2[%c0_5, %c0_6] : memref<1x32xf32, #tpu.memory_space<vmem>>, vector<1x32xf32>
    %20 = vector.broadcast %19 : vector<1x32xf32> to vector<8x32xf32>
    %21 = arith.mulf %18, %20 : vector<8x32xf32>
    %c0_7 = arith.constant 0 : index
    %c0_8 = arith.constant 0 : index
    %22 = vector.load %arg3[%c0_7, %c0_8] : memref<1x32xf32, #tpu.memory_space<vmem>>, vector<1x32xf32>
    %23 = vector.broadcast %22 : vector<1x32xf32> to vector<8x32xf32>
    %24 = arith.addf %21, %23 : vector<8x32xf32>
    %25 = arith.truncf %24 : vector<8x32xf32> to vector<8x32xbf16>
    %c0_9 = arith.constant 0 : index
    %c0_10 = arith.constant 0 : index
    %26 = vector.load %arg4[%c0_9, %c0_10] : memref<32x32xbf16, #tpu.memory_space<vmem>>, vector<32x32xbf16>
    %cst_11 = arith.constant dense<0.000000e+00> : vector<8x32xf32>
    %27 = tpu.matmul %25, %26, %cst_11 {dimension_numbers = #tpu.dot_dimension_numbers<[1], [0], [0], [1], [0, 0, 1, 1], [], []>} : vector<8x32xbf16>, vector<32x32xbf16>, vector<8x32xf32> -> vector<8x32xf32>
    %c0_12 = arith.constant 0 : index
    %c0_13 = arith.constant 0 : index
    %28 = vector.load %arg5[%c0_12, %c0_13] : memref<1x32xf32, #tpu.memory_space<vmem>>, vector<1x32xf32>
    %29 = vector.broadcast %28 : vector<1x32xf32> to vector<8x32xf32>
    %30 = arith.addf %27, %29 : vector<8x32xf32>
    %cst_14 = arith.constant 0.000000e+00 : f32
    %31 = vector.broadcast %cst_14 : f32 to vector<8x32xf32>
    %32 = arith.maximumf %30, %31 : vector<8x32xf32>
    %33 = arith.truncf %32 : vector<8x32xf32> to vector<8x32xbf16>
    %c0_15 = arith.constant 0 : index
    %c0_16 = arith.constant 0 : index
    %34 = vector.load %arg6[%c0_15, %c0_16] : memref<32x128xbf16, #tpu.memory_space<vmem>>, vector<32x128xbf16>
    %cst_17 = arith.constant dense<0.000000e+00> : vector<8x128xf32>
    %35 = tpu.matmul %33, %34, %cst_17 {dimension_numbers = #tpu.dot_dimension_numbers<[1], [0], [0], [1], [0, 0, 1, 1], [], []>} : vector<8x32xbf16>, vector<32x128xbf16>, vector<8x128xf32> -> vector<8x128xf32>
    %c0_18 = arith.constant 0 : index
    %c0_19 = arith.constant 0 : index
    %36 = vector.load %arg7[%c0_18, %c0_19] : memref<1x128xf32, #tpu.memory_space<vmem>>, vector<1x128xf32>
    %37 = vector.broadcast %36 : vector<1x128xf32> to vector<8x128xf32>
    %38 = arith.addf %35, %37 : vector<8x128xf32>
    %39 = tpu.iota {dimensions = array<i32: 1>} : vector<8x128xi32>
    %cst_20 = arith.constant dense<0xFF800000> : vector<8xf32>
    %40 = vector.multi_reduction <maximumf>, %38, %cst_20 [1] : vector<8x128xf32> to vector<8xf32>
    %41 = vector.shape_cast %40 : vector<8xf32> to vector<8x1xf32>
    %42 = vector.broadcast %41 : vector<8x1xf32> to vector<8x128xf32>
    %43 = arith.cmpf oeq, %38, %42 : vector<8x128xf32>
    %c128_i32 = arith.constant 128 : i32
    %44 = vector.broadcast %c128_i32 : i32 to vector<8x128xi32>
    %45 = arith.select %43, %39, %44 : vector<8x128xi1>, vector<8x128xi32>
    %cst_21 = arith.constant dense<2147483647> : vector<8xi32>
    %46 = vector.multi_reduction <minsi>, %45, %cst_21 [1] : vector<8x128xi32> to vector<8xi32>
    %47 = vector.shape_cast %46 : vector<8xi32> to vector<8x1xi32>
    %48 = vector.broadcast %47 : vector<8x1xi32> to vector<8x128xi32>
    %49 = arith.cmpi eq, %39, %48 : vector<8x128xi32>
    %50 = vector.broadcast %41 : vector<8x1xf32> to vector<8x128xf32>
    %51 = arith.subf %38, %50 : vector<8x128xf32>
    %52 = math.exp %51 : vector<8x128xf32>
    %cst_22 = arith.constant dense<0.000000e+00> : vector<8xf32>
    %53 = vector.multi_reduction <add>, %52, %cst_22 [1] : vector<8x128xf32> to vector<8xf32>
    %54 = vector.shape_cast %53 : vector<8xf32> to vector<8x1xf32>
    %55 = math.log %54 : vector<8x1xf32>
    %56 = arith.addf %41, %55 : vector<8x1xf32>
    %57 = arith.subf %41, %56 : vector<8x1xf32>
    %58 = arith.mulf %52, %38 : vector<8x128xf32>
    %cst_23 = arith.constant dense<0.000000e+00> : vector<8xf32>
    %59 = vector.multi_reduction <add>, %58, %cst_23 [1] : vector<8x128xf32> to vector<8xf32>
    %60 = vector.shape_cast %59 : vector<8xf32> to vector<8x1xf32>
    %61 = arith.divf %60, %54 : vector<8x1xf32>
    %62 = arith.subf %56, %61 : vector<8x1xf32>
    %c125_i32 = arith.constant 125 : i32
    %63 = vector.broadcast %c125_i32 : i32 to vector<8x128xi32>
    %64 = arith.cmpi eq, %39, %63 : vector<8x128xi32>
    %65 = arith.sitofp %47 : vector<8x1xi32> to vector<8x1xf32>
    %c126_i32 = arith.constant 126 : i32
    %66 = vector.broadcast %c126_i32 : i32 to vector<8x128xi32>
    %67 = arith.cmpi eq, %39, %66 : vector<8x128xi32>
    %c127_i32 = arith.constant 127 : i32
    %68 = vector.broadcast %c127_i32 : i32 to vector<8x128xi32>
    %69 = arith.cmpi eq, %39, %68 : vector<8x128xi32>
    %70 = vector.shape_cast %62 : vector<8x1xf32> to vector<8x1xf32>
    %71 = vector.broadcast %70 : vector<8x1xf32> to vector<8x128xf32>
    %72 = arith.select %69, %71, %38 : vector<8x128xi1>, vector<8x128xf32>
    %73 = vector.shape_cast %57 : vector<8x1xf32> to vector<8x1xf32>
    %74 = vector.broadcast %73 : vector<8x1xf32> to vector<8x128xf32>
    %75 = arith.select %67, %74, %72 : vector<8x128xi1>, vector<8x128xf32>
    %76 = vector.shape_cast %65 : vector<8x1xf32> to vector<8x1xf32>
    %77 = vector.broadcast %76 : vector<8x1xf32> to vector<8x128xf32>
    %78 = arith.select %64, %77, %75 : vector<8x128xi1>, vector<8x128xf32>
    %c0_24 = arith.constant 0 : index
    %c0_25 = arith.constant 0 : index
    %79 = vector.load %arg9[%c0_24, %c0_25] : memref<8x128xf32, #tpu.memory_space<vmem>>, vector<8x128xf32>
    tpu.vector_store %arg9[%c0_24, %c0_25], %78 {strides = array<i32>} : memref<8x128xf32, #tpu.memory_space<vmem>>, vector<8x128xf32>,
    %80 = arith.extui %49 : vector<8x128xi1> to vector<8x128xi32>
    %81 = arith.sitofp %80 : vector<8x128xi32> to vector<8x128xf32>
    %82 = arith.truncf %81 : vector<8x128xf32> to vector<8x128xbf16>
    %c0_26 = arith.constant 0 : index
    %c0_27 = arith.constant 0 : index
    %83 = vector.load %arg8[%c0_26, %c0_27] : memref<128x32xbf16, #tpu.memory_space<vmem>>, vector<128x32xbf16>
    %cst_28 = arith.constant dense<0.000000e+00> : vector<8x32xf32>
    %84 = tpu.matmul %82, %83, %cst_28 {dimension_numbers = #tpu.dot_dimension_numbers<[1], [0], [0], [1], [0, 0, 1, 1], [], []>} : vector<8x128xbf16>, vector<128x32xbf16>, vector<8x32xf32> -> vector<8x32xf32>
    %85 = arith.addf %0, %84 : vector<8x32xf32>
    %c0_29 = arith.constant 0 : index
    %c0_30 = arith.constant 0 : index
    %86 = vector.load %arg10[%c0_29, %c0_30] : memref<8x32xf32, #tpu.memory_space<vmem>>, vector<8x32xf32>
    tpu.vector_store %arg10[%c0_29, %c0_30], %85 {strides = array<i32>} : memref<8x32xf32, #tpu.memory_space<vmem>>, vector<8x32xf32>,
    return
  }
  func.func @transform_0(%arg0: i32) -> (i32, i32) {
    %c0_i32 = arith.constant 0 : i32
    %c0_i32_0 = arith.constant 0 : i32
    return %arg0, %c0_i32 : i32, i32
  }
  func.func @transform_1(%arg0: i32) -> (i32, i32) {
    %c0_i32 = arith.constant 0 : i32
    %c0_i32_0 = arith.constant 0 : i32
    %c0_i32_1 = arith.constant 0 : i32
    return %c0_i32, %c0_i32_0 : i32, i32
  }
  func.func @transform_2(%arg0: i32) -> (i32, i32) {
    %c0_i32 = arith.constant 0 : i32
    %c0_i32_0 = arith.constant 0 : i32
    %c0_i32_1 = arith.constant 0 : i32
    return %c0_i32, %c0_i32_0 : i32, i32
  }
  func.func @transform_3(%arg0: i32) -> (i32, i32) {
    %c0_i32 = arith.constant 0 : i32
    %c0_i32_0 = arith.constant 0 : i32
    %c0_i32_1 = arith.constant 0 : i32
    return %c0_i32, %c0_i32_0 : i32, i32
  }
  func.func @transform_4(%arg0: i32) -> (i32, i32) {
    %c0_i32 = arith.constant 0 : i32
    %c0_i32_0 = arith.constant 0 : i32
    %c0_i32_1 = arith.constant 0 : i32
    return %c0_i32, %c0_i32_0 : i32, i32
  }
  func.func @transform_5(%arg0: i32) -> (i32, i32) {
    %c0_i32 = arith.constant 0 : i32
    %c0_i32_0 = arith.constant 0 : i32
    %c0_i32_1 = arith.constant 0 : i32
    return %c0_i32, %c0_i32_0 : i32, i32
  }
  func.func @transform_6(%arg0: i32) -> (i32, i32) {
    %c0_i32 = arith.constant 0 : i32
    %c0_i32_0 = arith.constant 0 : i32
    %c0_i32_1 = arith.constant 0 : i32
    return %c0_i32, %c0_i32_0 : i32, i32
  }
  func.func @transform_7(%arg0: i32) -> (i32, i32) {
    %c0_i32 = arith.constant 0 : i32
    %c0_i32_0 = arith.constant 0 : i32
    %c0_i32_1 = arith.constant 0 : i32
    return %c0_i32, %c0_i32_0 : i32, i32
  }
  func.func @transform_8(%arg0: i32) -> (i32, i32) {
    %c0_i32 = arith.constant 0 : i32
    %c0_i32_0 = arith.constant 0 : i32
    return %arg0, %c0_i32 : i32, i32
  }
  func.func @transform_9(%arg0: i32) -> (i32, i32) {
    %c0_i32 = arith.constant 0 : i32
    %c0_i32_0 = arith.constant 0 : i32
    return %arg0, %c0_i32 : i32, i32
  }
}

</mosaic_0001>

<llo_original>
// kernel: tpu_custom_call.1
$region0: #{tpu_custom_call.1}
  #allocation0 [shape = 'u32[]', space=smem, size = 0x4, offset = 0x4, fixed_abs, tag = 'smem constant byte address 0x4 - core index']
  #allocation1 [shape = 'u32[144,128]{1,0:T(1,128)}', space=vmem, size = 0x12000, scoped, tag = 'internal scratch']
  %s0 = inlined_call_operand.vmem [shape: f32[8,32], index: 0, kind: input, shape index: {}]
  %s1 = inlined_call_operand.vmem [shape: f32[1,32], index: 1, kind: input, shape index: {}]
  %s2 = inlined_call_operand.vmem [shape: f32[1,32], index: 2, kind: input, shape index: {}]
  %s3 = inlined_call_operand.vmem [shape: bf16[32,32], index: 3, kind: input, shape index: {}]
  %s4 = inlined_call_operand.vmem [shape: f32[1,32], index: 4, kind: input, shape index: {}]
  %s5 = inlined_call_operand.vmem [shape: bf16[32,128], index: 5, kind: input, shape index: {}]
  %s6 = inlined_call_operand.vmem [shape: f32[1,128], index: 6, kind: input, shape index: {}]
  %s7 = inlined_call_operand.vmem [shape: bf16[128,32], index: 7, kind: input, shape index: {}]
  %s8 = inlined_call_operand.hbm [shape: f32[8,128], index: 8, kind: output, shape index: {0}]
  %s9 = inlined_call_operand.hbm [shape: f32[8,32], index: 9, kind: output, shape index: {1}]
  %10 = xla_tuple %s8, %s9
  %s11 = sld [smem:[#allocation0]]
  $region50: #{tpu_custom_call.1} parent=0
    _
  %s13 = ssub.s32 1, %s11
  %s14 = scalar_select 0, %s13, %s11
  $region1: #{tpu_custom_call.1} parent=0
    #allocation2 [shape = 'u8[4096]{0}', space=vmem, size = 0x1000, scoped, tag = 'output window, operand 0, single buffered']
    #allocation3 [shape = 's32[1]{0}', space=sflag, size = 0x4, scoped, tag = 'scoped memory for tpu_custom_call.1']
    #allocation4 [shape = 'u8[4096]{0}', space=vmem, size = 0x1000, scoped, tag = 'output window, operand 1, single buffered']
    #allocation5 [shape = 's32[1]{0}', space=sflag, size = 0x4, scoped, tag = 'scoped memory for tpu_custom_call.1']
    %15 = vsyncpa [#allocation3], 0
    %16 = vsyncpa [#allocation5], 0
    // Predicated region
    $region2: #{tpu_custom_call.1} parent=1 // pred_check
      _
    $region3: #{tpu_custom_call.1} parent=1 // pred_check_branch
      %18 = sbr.rel (0) target = $region5
    $region4: #{tpu_custom_call.1} parent=1 // pred_region
      _
    $region5: #{tpu_custom_call.1} parent=1 // pred_fallthru
      _
    // Predicated region
    $region6: #{tpu_custom_call.1} parent=1 // pred_check
      _
    $region7: #{tpu_custom_call.1} parent=1 // pred_check_branch
      %20 = sbr.rel (0) target = $region9
    $region8: #{tpu_custom_call.1} parent=1 // pred_region
      _
    $region9: #{tpu_custom_call.1} parent=1 // pred_fallthru
      _
    // Predicated region
    $region10: #{tpu_custom_call.1} parent=1 // pred_check
      _
    $region11: #{tpu_custom_call.1} parent=1 // pred_check_branch
      %22 = sbr.rel (0) target = $region13
    $region12: #{tpu_custom_call.1} parent=1 // pred_region
      _
    $region13: #{tpu_custom_call.1} parent=1 // pred_fallthru
      _
    // Predicated region
    $region14: #{tpu_custom_call.1} parent=1 // pred_check
      _
    $region15: #{tpu_custom_call.1} parent=1 // pred_check_branch
      %24 = sbr.rel (0) target = $region17
    $region16: #{tpu_custom_call.1} parent=1 // pred_region
      _
    $region17: #{tpu_custom_call.1} parent=1 // pred_fallthru
      _
    // Predicated region
    $region18: #{tpu_custom_call.1} parent=1 // pred_check
      _
    $region19: #{tpu_custom_call.1} parent=1 // pred_check_branch
      %26 = sbr.rel (0) target = $region21
    $region20: #{tpu_custom_call.1} parent=1 // pred_region
      _
    $region21: #{tpu_custom_call.1} parent=1 // pred_fallthru
      _
    // Predicated region
    $region22: #{tpu_custom_call.1} parent=1 // pred_check
      _
    $region23: #{tpu_custom_call.1} parent=1 // pred_check_branch
      %28 = sbr.rel (0) target = $region25
    $region24: #{tpu_custom_call.1} parent=1 // pred_region
      _
    $region25: #{tpu_custom_call.1} parent=1 // pred_fallthru
      _
    // Predicated region
    $region26: #{tpu_custom_call.1} parent=1 // pred_check
      _
    $region27: #{tpu_custom_call.1} parent=1 // pred_check_branch
      %30 = sbr.rel (0) target = $region29
    $region28: #{tpu_custom_call.1} parent=1 // pred_region
      _
    $region29: #{tpu_custom_call.1} parent=1 // pred_fallthru
      _
    // Predicated region
    $region30: #{tpu_custom_call.1} parent=1 // pred_check
      _
    $region31: #{tpu_custom_call.1} parent=1 // pred_check_branch
      %32 = sbr.rel (0) target = $region33
    $region32: #{tpu_custom_call.1} parent=1 // pred_region
      _
    $region33: #{tpu_custom_call.1} parent=1 // pred_fallthru
      _
    %v34 = vld [vmem:[%s0] sm:$0xff]
    %vm35 = vcmask 261120
    %v36 = vsel %vm35, %v34, 0.0
    %37 = vadd.xlane.f32.xlu0 %v36
    %v38 = vpop.xlane.xlu0 %37
    %v39 = vmul.f32 %v38, 0.03125
    %v40 = vmul.f32 %v34, %v34
    %v41 = vsel %vm35, %v40, 0.0
    %42 = vadd.xlane.f32.xlu0 %v41
    %v43 = vpop.xlane.xlu0 %42
    %v44 = vmul.f32 %v43, 0.03125
    %v45 = vmul.f32 %v39, %v39
    %v46 = vsub.f32 %v44, %v45
    %v47 = vsub.f32 %v34, %v39
    %v48 = vadd.f32 %v46, 1e-05
    %v49 = vrsqrt.pop %v48
    %v50 = vmul.f32 %v47, %v49
    %v51 = vld [vmem:[%s1] sm:$0x1]
    %v53 = vlaneseq
    %v54 = vshrl.u32 %v53, 7
    %v55 = vsub.s32 0, %v54
    %v56 = vrot.slane %v51, %v55
    %v58 = vmul.f32 %v50, %v56
    %v59 = vld [vmem:[%s2] sm:$0x1]
    %v61 = vlaneseq
    %v62 = vshrl.u32 %v61, 7
    %v63 = vsub.s32 0, %v62
    %v64 = vrot.slane %v59, %v63
    %v66 = vadd.f32 %v58, %v64
    %v67 = vpack.c.bf16 %v66, %v66
    %v68 = vld [vmem:[%s3] sm:$0xf]
    %v69 = vld [vmem:[%s3 + $0x4] sm:$0xf]
    %v70 = vld [vmem:[%s3 + $0x8] sm:$0xf]
    %v71 = vld [vmem:[%s3 + $0xc] sm:$0xf]
    %v72 = vld [vmem:[%s4] sm:$0x1]
    %v74 = vlaneseq
    %v75 = vshrl.u32 %v74, 7
    %v76 = vsub.s32 0, %v75
    %v77 = vrot.slane %v72, %v76
    %v83 = vunpack.c.l.b16 %v68
    %v84 = vunpack.c.l.b16 %v69
    %v85 = vunpack.c.l.b16 %v70
    %v86 = vunpack.c.l.b16 %v71
    %v87 = vpack.c.b16 %v84, %v83
    %v88 = vpack.c.b16 %v86, %v85
    %v92 = vsel %vm35, %v67, 0
    %94 = vmatprep.subr.bf16.mxu0 0
    %95 = vmatpush1.bf16.msra.mxu0 %v87
    %96 = vmatprep.subr.bf16.mxu0 0
    %97 = vmatpush1.bf16.msra.mxu0 %v88
    %98 = vmatprep.subr.bf16.mxu0 0
    %99 = vmatpush1.bf16.msra.mxu0 0
    %100 = vmatprep.subr.bf16.mxu0 0
    %101 = vmatpush1.bf16.msra.mxu0 0
    %102 = vmatprep.subr.bf16.mxu0 0
    %103 = vmatpush1.bf16.msra.mxu0 0
    %104 = vmatprep.subr.bf16.mxu0 0
    %105 = vmatpush1.bf16.msra.mxu0 0
    %106 = vmatprep.subr.bf16.mxu0 0
    %107 = vmatpush1.bf16.msra.mxu0 0
    %108 = vmatprep.subr.bf16.mxu0 0
    %109 = vmatpush1.bf16.msra.mxu0 0
    %110 = vmatprep.subr.bf16.mxu0 0
    %111 = vmatpush1.bf16.msra.mxu0 0
    %112 = vmatprep.subr.bf16.mxu0 0
    %113 = vmatpush1.bf16.msra.mxu0 0
    %114 = vmatprep.subr.bf16.mxu0 0
    %115 = vmatpush1.bf16.msra.mxu0 0
    %116 = vmatprep.subr.bf16.mxu0 0
    %117 = vmatpush1.bf16.msra.mxu0 0
    %118 = vmatprep.subr.bf16.mxu0 0
    %119 = vmatpush1.bf16.msra.mxu0 0
    %120 = vmatprep.subr.bf16.mxu0 0
    %121 = vmatpush1.bf16.msra.mxu0 0
    %122 = vmatprep.subr.bf16.mxu0 0
    %123 = vmatpush1.bf16.msra.mxu0 0
    %124 = vmatprep.subr.bf16.mxu0 0
    %125 = vmatpush1.bf16.msra.mxu0 0
    %126 = vmatprep.mubr.bf16.mxu0 0
    %127 = vmatmul.mubr.bf16.gmra.mrb[0].mxu0 %v92
    %v128 = vpop.f32.mrb[0].mxu0
    %v129 = vadd.f32 %v77, %v128
    %v130 = vpop.f32.mrb[0].mxu0
    %v131 = vpop.f32.mrb[0].mxu0
    %v132 = vpop.f32.mrb[0].mxu0
    %133 = vdwg.mxu0
    %v134 = vmax.f32 %v129, 0.0
    %v135 = vpack.c.bf16 %v134, %v134
    %v136 = vld [vmem:[%s5] sm:$0xf]
    %v137 = vld [vmem:[%s5 + $0x4] sm:$0xf]
    %v138 = vld [vmem:[%s5 + $0x8] sm:$0xf]
    %v139 = vld [vmem:[%s5 + $0xc] sm:$0xf]
    %v140 = vld [vmem:[%s6] sm:$0x1]
    %v142 = vlaneseq
    %v143 = vshrl.u32 %v142, 7
    %v144 = vsub.s32 0, %v143
    %v145 = vrot.slane %v140, %v144
    %v151 = vunpack.c.l.b16 %v136
    %v152 = vunpack.c.l.b16 %v137
    %v153 = vunpack.c.l.b16 %v138
    %v154 = vunpack.c.l.b16 %v139
    %v155 = vpack.c.b16 %v152, %v151
    %v156 = vpack.c.b16 %v154, %v153
    %v160 = vsel %vm35, %v135, 0
    %162 = vmatprep.subr.bf16.mxu0 0
    %163 = vmatpush1.bf16.msra.mxu0 %v155
    %164 = vmatprep.subr.bf16.mxu0 0
    %165 = vmatpush1.bf16.msra.mxu0 %v156
    %166 = vmatprep.subr.bf16.mxu0 0
    %167 = vmatpush1.bf16.msra.mxu0 0
    %168 = vmatprep.subr.bf16.mxu0 0
    %169 = vmatpush1.bf16.msra.mxu0 0
    %170 = vmatprep.subr.bf16.mxu0 0
    %171 = vmatpush1.bf16.msra.mxu0 0
    %172 = vmatprep.subr.bf16.mxu0 0
    %173 = vmatpush1.bf16.msra.mxu0 0
    %174 = vmatprep.subr.bf16.mxu0 0
    %175 = vmatpush1.bf16.msra.mxu0 0
    %176 = vmatprep.subr.bf16.mxu0 0
    %177 = vmatpush1.bf16.msra.mxu0 0
    %178 = vmatprep.subr.bf16.mxu0 0
    %179 = vmatpush1.bf16.msra.mxu0 0
    %180 = vmatprep.subr.bf16.mxu0 0
    %181 = vmatpush1.bf16.msra.mxu0 0
    %182 = vmatprep.subr.bf16.mxu0 0
    %183 = vmatpush1.bf16.msra.mxu0 0
    %184 = vmatprep.subr.bf16.mxu0 0
    %185 = vmatpush1.bf16.msra.mxu0 0
    %186 = vmatprep.subr.bf16.mxu0 0
    %187 = vmatpush1.bf16.msra.mxu0 0
    %188 = vmatprep.subr.bf16.mxu0 0
    %189 = vmatpush1.bf16.msra.mxu0 0
    %190 = vmatprep.subr.bf16.mxu0 0
    %191 = vmatpush1.bf16.msra.mxu0 0
    %192 = vmatprep.subr.bf16.mxu0 0
    %193 = vmatpush1.bf16.msra.mxu0 0
    %194 = vmatprep.mubr.bf16.mxu0 0
    %195 = vmatmul.mubr.bf16.gmra.mrb[0].mxu0 %v160
    %v196 = vpop.f32.mrb[0].mxu0
    %v197 = vadd.f32 %v145, %v196
    %v198 = vpop.f32.mrb[0].mxu0
    %v199 = vpop.f32.mrb[0].mxu0
    %v200 = vpop.f32.mrb[0].mxu0
    %201 = vdwg.mxu0
    %v202 = vlaneseq
    %v203 = vand.u32 %v202, 127
    %204 = vmax.xlane.f32.xlu0 %v197
    %v205 = vpop.xlane.xlu0 %204
    %vm206 = vcmp.eq.f32.partialorder %v197, %v205
    %v207 = vsel %vm206, %v203, 128
    %v208 = vand.u32 %v207, 65535
    %v209 = vshra.s32 %v207, 16
    %v210 = vcvt.s32.f32 %v208
    %v211 = vcvt.s32.f32 %v209
    %212 = vmin.xlane.f32.xlu0 %v211
    %v213 = vpop.xlane.xlu0 %212
    %vm214 = vcmp.eq.f32.partialorder %v211, %v213
    %v215 = vsel %vm214, %v210, inf
    %216 = vmin.xlane.f32.xlu0 %v215
    %v217 = vpop.xlane.xlu0 %216
    %v218 = vcvt.f32.s32 %v217
    %v219 = vcvt.f32.s32 %v213
    %v220 = vshll.u32 %v219, 16
    %v221 = vadd.s32 %v220, %v218
    %vm222 = vcmp.eq.s32.totalorder %v203, %v221
    %v223 = vsub.f32 %v197, %v205
    %v224 = vmul.f32 %v223, 1.442695
    %v225 = vpow.pop %v224
    %226 = vadd.xlane.f32.xlu0 %v225
    %v227 = vpop.xlane.xlu0 %226
    %v228 = vlog2.pop %v227
    %v229 = vmul.f32 %v228, 0.6931472
    %v230 = vadd.f32 %v205, %v229
    %v231 = vsub.f32 %v205, %v230
    %v232 = vmul.f32 %v225, %v197
    %233 = vadd.xlane.f32.xlu0 %v232
    %v234 = vpop.xlane.xlu0 %233
    %v235 = vrcp.pop %v227
    %v236 = vmul.f32 %v234, %v235
    %v237 = vsub.f32 %v230, %v236
    %vm238 = vcmp.eq.s32.totalorder %v203, 125
    %v239 = vcvt.s32.f32 %v221
    %vm240 = vcmp.eq.s32.totalorder %v203, 126
    %vm241 = vcmp.eq.s32.totalorder %v203, 127
    %v242 = vsel %vm241, %v237, %v197
    %v243 = vsel %vm240, %v231, %v242
    %v244 = vsel %vm238, %v239, %v243
    %245 = vst [vmem:[#allocation2] sm:$0xff] %v244
    %v246 = vsel %vm222, 1, 0
    %v247 = vcvt.s32.f32 %v246
    %v248 = vpack.c.bf16 %v247, %v247
    %v249 = vld [vmem:[%s7] sm:$0xf]
    %v250 = vld [vmem:[%s7 + $0x4] sm:$0xf]
    %v251 = vld [vmem:[%s7 + $0x8] sm:$0xf]
    %v252 = vld [vmem:[%s7 + $0xc] sm:$0xf]
    %v253 = vld [vmem:[%s7 + $0x10] sm:$0xf]
    %v254 = vld [vmem:[%s7 + $0x14] sm:$0xf]
    %v255 = vld [vmem:[%s7 + $0x18] sm:$0xf]
    %v256 = vld [vmem:[%s7 + $0x1c] sm:$0xf]
    %v257 = vld [vmem:[%s7 + $0x20] sm:$0xf]
    %v258 = vld [vmem:[%s7 + $0x24] sm:$0xf]
    %v259 = vld [vmem:[%s7 + $0x28] sm:$0xf]
    %v260 = vld [vmem:[%s7 + $0x2c] sm:$0xf]
    %v261 = vld [vmem:[%s7 + $0x30] sm:$0xf]
    %v262 = vld [vmem:[%s7 + $0x34] sm:$0xf]
    %v263 = vld [vmem:[%s7 + $0x38] sm:$0xf]
    %v264 = vld [vmem:[%s7 + $0x3c] sm:$0xf]
    %v281 = vunpack.c.l.b16 %v249
    %v282 = vunpack.c.l.b16 %v250
    %v283 = vunpack.c.l.b16 %v251
    %v284 = vunpack.c.l.b16 %v252
    %v285 = vunpack.c.l.b16 %v253
    %v286 = vunpack.c.l.b16 %v254
    %v287 = vunpack.c.l.b16 %v255
    %v288 = vunpack.c.l.b16 %v256
    %v289 = vunpack.c.l.b16 %v257
    %v290 = vunpack.c.l.b16 %v258
    %v291 = vunpack.c.l.b16 %v259
    %v292 = vunpack.c.l.b16 %v260
    %v293 = vunpack.c.l.b16 %v261
    %v294 = vunpack.c.l.b16 %v262
    %v295 = vunpack.c.l.b16 %v263
    %v296 = vunpack.c.l.b16 %v264
    %v297 = vpack.c.b16 %v282, %v281
    %v298 = vpack.c.b16 %v284, %v283
    %v299 = vpack.c.b16 %v286, %v285
    %v300 = vpack.c.b16 %v288, %v287
    %v301 = vpack.c.b16 %v290, %v289
    %v302 = vpack.c.b16 %v292, %v291
    %v303 = vpack.c.b16 %v294, %v293
    %v304 = vpack.c.b16 %v296, %v295
    %313 = vmatprep.subr.bf16.mxu0 0
    %314 = vmatpush1.bf16.msra.mxu0 %v297
    %315 = vmatprep.subr.bf16.mxu0 0
    %316 = vmatpush1.bf16.msra.mxu0 %v298
    %317 = vmatprep.subr.bf16.mxu0 0
    %318 = vmatpush1.bf16.msra.mxu0 %v299
    %319 = vmatprep.subr.bf16.mxu0 0
    %320 = vmatpush1.bf16.msra.mxu0 %v300
    %321 = vmatprep.subr.bf16.mxu0 0
    %322 = vmatpush1.bf16.msra.mxu0 %v301
    %323 = vmatprep.subr.bf16.mxu0 0
    %324 = vmatpush1.bf16.msra.mxu0 %v302
    %325 = vmatprep.subr.bf16.mxu0 0
    %326 = vmatpush1.bf16.msra.mxu0 %v303
    %327 = vmatprep.subr.bf16.mxu0 0
    %328 = vmatpush1.bf16.msra.mxu0 %v304
    %329 = vmatprep.subr.bf16.mxu0 0
    %330 = vmatpush1.bf16.msra.mxu0 0
    %331 = vmatprep.subr.bf16.mxu0 0
    %332 = vmatpush1.bf16.msra.mxu0 0
    %333 = vmatprep.subr.bf16.mxu0 0
    %334 = vmatpush1.bf16.msra.mxu0 0
    %335 = vmatprep.subr.bf16.mxu0 0
    %336 = vmatpush1.bf16.msra.mxu0 0
    %337 = vmatprep.subr.bf16.mxu0 0
    %338 = vmatpush1.bf16.msra.mxu0 0
    %339 = vmatprep.subr.bf16.mxu0 0
    %340 = vmatpush1.bf16.msra.mxu0 0
    %341 = vmatprep.subr.bf16.mxu0 0
    %342 = vmatpush1.bf16.msra.mxu0 0
    %343 = vmatprep.subr.bf16.mxu0 0
    %344 = vmatpush1.bf16.msra.mxu0 0
    %345 = vmatprep.mubr.bf16.mxu0 0
    %346 = vmatmul.mubr.bf16.gmra.mrb[0].mxu0 %v248
    %v347 = vpop.f32.mrb[0].mxu0
    %v348 = vadd.f32 0.0, %v347
    %v349 = vpop.f32.mrb[0].mxu0
    %v350 = vpop.f32.mrb[0].mxu0
    %v351 = vpop.f32.mrb[0].mxu0
    %352 = vdwg.mxu0
    %v353 = vadd.f32 %v34, %v348
    %354 = vst.msk [vmem:[#allocation4] sm:$0xff] %vm35, %v353
    // Predicated region
    $region34: #{tpu_custom_call.1} parent=1 // pred_check
      _
    $region35: #{tpu_custom_call.1} parent=1 // pred_check_branch
      %356 = sbr.rel (0) target = $region37
    $region36: #{tpu_custom_call.1} parent=1 // pred_region
      %s358 = ssub.s32 128, 128
      %359 = vsyncadd [#allocation3], %s358
      %s361 = sshll.u32 [#allocation2], 4
      %s362 = int_to_ptr.vmem [resolvable:$true] %s361
      %364 = dma.vmem_to_hbm [thread:$0]  %s362, 128, %s8, [#allocation3]
    $region37: #{tpu_custom_call.1} parent=1 // pred_fallthru
      _
    // Predicated region
    $region38: #{tpu_custom_call.1} parent=1 // pred_check
      _
    $region39: #{tpu_custom_call.1} parent=1 // pred_check_branch
      %366 = sbr.rel (0) target = $region41
    $region40: #{tpu_custom_call.1} parent=1 // pred_region
      %s368 = ssub.s32 128, 128
      %369 = vsyncadd [#allocation5], %s368
      %s371 = sshll.u32 [#allocation4], 4
      %s372 = int_to_ptr.vmem [resolvable:$true] %s371
      %374 = dma.vmem_to_hbm [thread:$0]  %s372, 128, %s9, [#allocation5]
    $region41: #{tpu_custom_call.1} parent=1 // pred_fallthru
      _
    // Predicated region
    $region42: #{tpu_custom_call.1} parent=1 // pred_check
      _
    $region43: #{tpu_custom_call.1} parent=1 // pred_check_branch
      %376 = sbr.rel (0) target = $region45
    $region44: #{tpu_custom_call.1} parent=1 // pred_region
      %377 = dma.done [#allocation3], 128
    $region45: #{tpu_custom_call.1} parent=1 // pred_fallthru
      _
    // Predicated region
    $region46: #{tpu_custom_call.1} parent=1 // pred_check
      _
    $region47: #{tpu_custom_call.1} parent=1 // pred_check_branch
      %379 = sbr.rel (0) target = $region49
    $region48: #{tpu_custom_call.1} parent=1 // pred_region
      %380 = dma.done [#allocation5], 128
    $region49: #{tpu_custom_call.1} parent=1 // pred_fallthru
      _
    %381 = vsyncpa [#allocation3], 1
    %382 = vsyncpa [#allocation5], 1

</llo_original>
